<compile_context>
chip_gen: v5e
topology: v5e:2x2
jax: 0.10.0
libtpu: 0.0.40
codegen_flags: <defaults>
</compile_context>

<pallas_src>
import jax
import jax.numpy as jnp
from jax.experimental import pallas as pl
from jax.experimental.pallas import tpu as pltpu

# Module defaults from the PyTorch spec.
IN_CHANNELS = 3
PATCH_SIZE = 16
EMBED_DIM = 256
EMBED_DROPOUT = 0.0  # p=0 -> identity


def _round_up(a: int, b: int) -> int:
    return pl.cdiv(a, b) * b


def _sublane_multiple(dtype) -> int:
    # (8,128) vregs hold 32-bit words; sub-32-bit dtypes pack along sublanes:
    # 8 for f32, 16 for bf16, 32 for int8/fp8.
    return max(8, 32 // jnp.dtype(dtype).itemsize)


def _vit_input_validation(x, patch_size):
    assert x.ndim == 4, f"input must be 4D [B C H W], got {x.ndim}D"
    assert x.shape[-2] % patch_size == 0, "H must be divisible by patch size"
    assert x.shape[-1] % patch_size == 0, "W must be divisible by patch size"


def _patch_embed_matmul_kernel(x_ref, w_ref, o_ref):
    # x_ref: (tm, K) tile of flattened patches (VMEM)
    # w_ref: (K, DP) full (lane-padded) weight, resident across the grid
    # o_ref: (tm, DP) lane-dense output tile
    o_ref[...] = jnp.dot(
        x_ref[...], w_ref[...], preferred_element_type=jnp.float32
    ).astype(o_ref.dtype)


def patch_embedding(x, weight, patch_size=PATCH_SIZE, *, row_tile=1024,
                    compute_dtype=None):
    """x: [B, C, H, W].  weight: [K, D] with K = P*P*C (inner order ph, pw, c
    -- i.e. the transpose of the PyTorch nn.Linear weight).  Returns [B, N, D]
    in x.dtype.  compute_dtype=jnp.bfloat16 halves HBM bytes and uses the
    native bf16 MXU path (accumulation stays f32).
    """
    _vit_input_validation(x, patch_size)
    B, C, H, W = x.shape
    P = patch_size
    N = (H // P) * (W // P)
    K = C * P * P
    D = weight.shape[1]
    assert weight.shape[0] == K

    out_dtype = x.dtype
    if compute_dtype is None:
        compute_dtype = x.dtype

    # --- im2col: identical to the PyTorch reshape/permute(0,2,4,3,5,1).
    # With allow_input_fusion below, XLA is allowed to fold this (and the
    # cast) into the pallas_call's activation fetch instead of materializing
    # xp in HBM. ---
    xp = x.reshape(B, C, H // P, P, W // P, P)
    xp = jnp.transpose(xp, (0, 2, 4, 3, 5, 1))          # [B, H/P, W/P, P, P, C]
    xp = xp.reshape(B * N, K).astype(compute_dtype)
    weight = weight.astype(compute_dtype)
    M = B * N

    # --- lane-dense output: pad the weight columns up to a multiple of 128 so
    # stores lower to full-width vst (no-op for the module default D=256). ---
    DP = max(128, _round_up(D, 128))
    if DP != D:
        weight = jnp.pad(weight, ((0, 0), (0, DP - D)))

    # --- row tiling: dtype-aware sublane rounding, no explicit row padding
    # (Pallas masks the ragged last block). ---
    sub = max(_sublane_multiple(compute_dtype), _sublane_multiple(out_dtype))
    tm = _round_up(max(int(row_tile), sub), sub)
    if M > sub:
        # Keep >= 2 grid steps so the "parallel" axis can feed both v7x TCs.
        tm = min(tm, _round_up(pl.cdiv(M, 2), sub))
    if tm >= M:
        tm = M  # single full-extent block (always a legal block shape)
    grid_m = pl.cdiv(M, tm)

    in_bytes = jnp.dtype(compute_dtype).itemsize
    out_bytes = jnp.dtype(out_dtype).itemsize
    cost = pl.CostEstimate(
        flops=2 * M * K * DP,
        transcendentals=0,
        bytes_accessed=in_bytes * (M * K + K * DP) + out_bytes * M * DP,
    )

    out = pl.pallas_call(
        _patch_embed_matmul_kernel,
        out_shape=jax.ShapeDtypeStruct((M, DP), out_dtype),
        grid_spec=pltpu.PrefetchScalarGridSpec(
            num_scalar_prefetch=0,
            grid=(grid_m,),
            in_specs=[
                # Activation: one (tm, K) row tile per grid step; the last
                # tile may be ragged (masked boundary DMA/store).
                pl.BlockSpec((tm, K), lambda i: (i, 0)),
                # Weight: constant block index -> DMA'd once, VMEM-resident.
                pl.BlockSpec((K, DP), lambda i: (0, 0)),
            ],
            out_specs=pl.BlockSpec((tm, DP), lambda i: (i, 0)),
        ),
        compiler_params=pltpu.CompilerParams(
            # Row tiles are independent -> shard across TensorCores (v7x).
            dimension_semantics=("parallel",),
            # Let XLA fold the patchify transpose/cast into the activation
            # fetch (kills the separate im2col HBM round trip).
            allow_input_fusion=[True, False],
        ),
        cost_estimate=cost,
    )(xp, weight)

    # Strip lane padding (no-op for D=256); Dropout(p=0.0) is the identity.
    if DP != D:
        out = out[:, :D]
    return out.reshape(B, N, D)


def reference_patch_embedding(x, weight, patch_size=PATCH_SIZE):
    B, C, H, W = x.shape
    P = patch_size
    N = (H // P) * (W // P)
    K = C * P * P
    xp = x.reshape(B, C, H // P, P, W // P, P)
    xp = jnp.transpose(xp, (0, 2, 4, 3, 5, 1)).reshape(B, N, K)
    return jnp.einsum(
        "bnk,kd->bnd", xp, weight, precision=jax.lax.Precision.HIGHEST
    )


if __name__ == "__main__":
    key = jax.random.PRNGKey(0)
    kx, kw = jax.random.split(key)

    # Small shapes, module-default hyperparameters (C=3, P=16, D=256).
    B, C, H, W = 2, IN_CHANNELS, 48, 48
    P, D = PATCH_SIZE, EMBED_DIM
    K = C * P * P                      # 768 (lane-dense)
    N = (H // P) * (W // P)            # 9 patches per image -> M = 18

    x = jax.random.normal(kx, (B, C, H, W), dtype=jnp.float32)
    # Deterministic Linear weight (PyTorch shape [D, K]); kernel wants [K, D].
    bound = 1.0 / float(K) ** 0.5
    w_torch_layout = jax.random.uniform(
        kw, (D, K), dtype=jnp.float32, minval=-bound, maxval=bound
    )
    weight = w_torch_layout.T          # [K, D]

    ref = reference_patch_embedding(x, weight, patch_size=P)

    # Default (f32) path: two row tiles with a ragged (masked) last block.
    out = jax.block_until_ready(patch_embedding(x, weight, patch_size=P))
    assert out.shape == (B, N, D)
    assert jnp.allclose(out, ref, atol=1e-3, rtol=1e-3)

    # Tiny row tile: exercises a longer grid (3 steps) + masked ragged tail.
    out_tiled = jax.block_until_ready(
        patch_embedding(x, weight, patch_size=P, row_tile=8)
    )
    assert out_tiled.shape == (B, N, D)
    assert jnp.allclose(out_tiled, ref, atol=1e-3, rtol=1e-3)

    # bf16 compute path (v6e/v7x fast path): bf16 inputs, f32 accumulation,
    # dtype-aware (16-row) sublane rounding; looser tolerance for bf16 inputs.
    out_bf16 = jax.block_until_ready(
        patch_embedding(x, weight, patch_size=P, compute_dtype=jnp.bfloat16)
    )
    assert out_bf16.shape == (B, N, D)
    assert jnp.allclose(out_bf16, ref, atol=3e-2, rtol=3e-2)

    print("KERNEL_OK")
</pallas_src>

<mosaic_0001>
module attributes {stable_mosaic.version = 11 : i64} {
  func.func @_patch_embed_matmul_kernel(%arg0: i32, %arg1: memref<16x768xf32, #tpu.memory_space<vmem>>, %arg2: memref<768x256xf32, #tpu.memory_space<vmem>>, %arg3: memref<16x256xf32, #tpu.memory_space<vmem>>) attributes {dimension_semantics = [#tpu.dimension_semantics<parallel>], iteration_bounds = array<i64: 2>, scalar_prefetch = 0 : i64, scratch_operands = 0 : i64, tpu.core_type = #tpu.core_type<tc>, window_params = [{transform_indices = @transform_0, window_bounds = array<i64: 16, 768>}, {pipeline_mode = #tpu.pipeline_mode<synchronous>, transform_indices = @transform_1, window_bounds = array<i64: 768, 256>}, {transform_indices = @transform_2, window_bounds = array<i64: 16, 256>}]} {
    %c0 = arith.constant 0 : index
    %c0_0 = arith.constant 0 : index
    %0 = vector.load %arg1[%c0, %c0_0] : memref<16x768xf32, #tpu.memory_space<vmem>>, vector<16x768xf32>
    %c0_1 = arith.constant 0 : index
    %c0_2 = arith.constant 0 : index
    %1 = vector.load %arg2[%c0_1, %c0_2] : memref<768x256xf32, #tpu.memory_space<vmem>>, vector<768x256xf32>
    %cst = arith.constant dense<0.000000e+00> : vector<16x256xf32>
    %2 = tpu.matmul %0, %1, %cst {dimension_numbers = #tpu.dot_dimension_numbers<[1], [0], [0], [1], [0, 0, 1, 1], [], []>} : vector<16x768xf32>, vector<768x256xf32>, vector<16x256xf32> -> vector<16x256xf32>
    %c0_3 = arith.constant 0 : index
    %c0_4 = arith.constant 0 : index
    %3 = vector.load %arg3[%c0_3, %c0_4] : memref<16x256xf32, #tpu.memory_space<vmem>>, vector<16x256xf32>
    tpu.vector_store %arg3[%c0_3, %c0_4], %2 {strides = array<i32>} : memref<16x256xf32, #tpu.memory_space<vmem>>, vector<16x256xf32>,
    return
  }
  func.func @transform_0(%arg0: i32) -> (i32, i32) {
    %c0_i32 = arith.constant 0 : i32
    %c0_i32_0 = arith.constant 0 : i32
    return %arg0, %c0_i32 : i32, i32
  }
  func.func @transform_1(%arg0: i32) -> (i32, i32) {
    %c0_i32 = arith.constant 0 : i32
    %c0_i32_0 = arith.constant 0 : i32
    %c0_i32_1 = arith.constant 0 : i32
    return %c0_i32, %c0_i32_0 : i32, i32
  }
  func.func @transform_2(%arg0: i32) -> (i32, i32) {
    %c0_i32 = arith.constant 0 : i32
    %c0_i32_0 = arith.constant 0 : i32
    return %arg0, %c0_i32 : i32, i32
  }
}

</mosaic_0001>

<llo_original>
// kernel: tpu_custom_call.1
$region0: #{tpu_custom_call.1}
  #allocation0 [shape = 'u32[]', space=smem, size = 0x4, offset = 0x4, fixed_abs, tag = 'smem constant byte address 0x4 - core index']
  #allocation1 [shape = 'u32[72,128]{1,0:T(1,128)}', space=vmem, size = 0x9000, scoped, tag = 'internal scratch']
  %s0 = inlined_call_operand.hbm [shape: f32[18,768], index: 0, kind: input, shape index: {}]
  %s1 = inlined_call_operand.hbm [shape: f32[768,256], index: 1, kind: input, shape index: {}]
  %s2 = inlined_call_operand.hbm [shape: f32[18,256], index: 2, kind: output, shape index: {}]
  %s3 = sld [smem:[#allocation0]]
  $region49: #{tpu_custom_call.1} parent=0
    _
  %s5 = ssub.s32 1, %s3
  %s6 = scalar_select 0, %s5, %s3
  $region1: #{tpu_custom_call.1} parent=0
    #allocation2 [shape = 'u8[98304]{0}', space=vmem, size = 0x18000, scoped, tag = 'input window, operand 0']
    #allocation3 [shape = 's32[2]{0}', space=sflag, size = 0x8, scoped, tag = 'scoped memory for tpu_custom_call.1']
    #allocation4 [shape = 's32[2]{0}', space=sflag, size = 0x8, scoped, tag = 'scoped memory for tpu_custom_call.1']
    #allocation5 [shape = 'u8[786432]{0}', space=vmem, size = 0xc0000, scoped, tag = 'input window, operand 1, single buffered']
    #allocation6 [shape = 's32[1]{0}', space=sflag, size = 0x4, scoped, tag = 'scoped memory for tpu_custom_call.1']
    #allocation7 [shape = 'u8[32768]{0}', space=vmem, size = 0x8000, scoped, tag = 'output window, operand 0']
    %7 = vsyncpa [#allocation3], 0
    %s8 = scalar_lea.sflag [#allocation3], 1
    %9 = vsyncpa %s8, 0
    %10 = vsyncpa [#allocation6], 0
    %11 = vsyncpa [#allocation4], 0
    %s12 = scalar_lea.sflag [#allocation4], 1
    %13 = vsyncpa %s12, 0
    loop: start=0, step=1, limit=4
    $region2: #{tpu_custom_call.1} parent=1 // loop_pre_header
      _
    $region3: #{tpu_custom_call.1} parent=1 // loop_header
      %s15 = sphi 0, %s19
      %p16 = scmp.ge.s32.totalorder %s15, 4
      %s25 = sphi 0, %s27
      %s28 = sphi 0, %s25
      %s29 = sphi 0, %s28
      %s45 = sphi 0, %s29
      %s49 = sphi 0, %s49
      %s51 = sphi 0, %s49
      %s52 = sphi 0, %s51
      %s66 = sphi 0, %s52
      %s72 = sphi 0, %s74
      %s75 = sphi 0, %s72
      %s76 = sphi 0, %s75
      %s92 = sphi 0, %s76
    $region4: #{tpu_custom_call.1} parent=1 // loop_header_branch
      %18 = sbr.rel (%p16) target = $region8
    $region5: #{tpu_custom_call.1} parent=1 // loop_body
      %s20 = ssub.s32 %s15, 1
      %s21 = ssub.s32 %s15, 2
      %s22 = sadd.s32 %s15, 1
      %s23 = ssub.s32 %s15, %s22
      %p24 = scmp.eq.s32.totalorder %s23, 0
      %s26 = sadd.s32 %s25, 1
      %s27 = scalar_select %p24, %s25, %s26
      %p30 = pneg %p24
      %p31 = scmp.eq.s32.totalorder %s15, 1
      %p32 = por %p30, %p31
      %p33 = scmp.ne.s32.totalorder %s25, %s28
      %p34 = scmp.eq.s32.totalorder %s15, 0
      %p35 = por %p33, %p34
      %p36 = scmp.ne.s32.totalorder %s25, %s28
      %p37 = scmp.eq.s32.totalorder %s20, 1
      %p38 = por %p36, %p37
      %p39 = scmp.ne.s32.totalorder %s28, %s29
      %p40 = scmp.eq.s32.totalorder %s20, 0
      %p41 = por %p39, %p40
      %p42 = scmp.ne.s32.totalorder %s28, %s29
      %p43 = scmp.eq.s32.totalorder %s21, 1
      %p44 = por %p42, %p43
      %p46 = scmp.ne.s32.totalorder %s29, %s45
      %p47 = scmp.eq.s32.totalorder %s21, 0
      %p48 = por %p46, %p47
      %s50 = sadd.s32 %s49, 1
      %p53 = scmp.eq.s32.totalorder %s15, 1
      %p54 = scmp.ne.s32.totalorder %s49, %s51
      %p55 = scmp.eq.s32.totalorder %s15, 0
      %p56 = por %p54, %p55
      %p57 = scmp.ne.s32.totalorder %s49, %s51
      %p58 = scmp.eq.s32.totalorder %s20, 1
      %p59 = por %p57, %p58
      %p60 = scmp.ne.s32.totalorder %s51, %s52
      %p61 = scmp.eq.s32.totalorder %s20, 0
      %p62 = por %p60, %p61
      %p63 = scmp.ne.s32.totalorder %s51, %s52
      %p64 = scmp.eq.s32.totalorder %s21, 1
      %p65 = por %p63, %p64
      %p67 = scmp.ne.s32.totalorder %s52, %s66
      %p68 = scmp.eq.s32.totalorder %s21, 0
      %p69 = por %p67, %p68
      %s70 = ssub.s32 %s15, %s22
      %p71 = scmp.eq.s32.totalorder %s70, 0
      %s73 = sadd.s32 %s72, 1
      %s74 = scalar_select %p71, %s72, %s73
      %p77 = pneg %p71
      %p78 = scmp.eq.s32.totalorder %s15, 1
      %p79 = por %p77, %p78
      %p80 = scmp.ne.s32.totalorder %s72, %s75
      %p81 = scmp.eq.s32.totalorder %s15, 0
      %p82 = por %p80, %p81
      %p83 = scmp.ne.s32.totalorder %s72, %s75
      %p84 = scmp.eq.s32.totalorder %s20, 1
      %p85 = por %p83, %p84
      %p86 = scmp.ne.s32.totalorder %s75, %s76
      %p87 = scmp.eq.s32.totalorder %s20, 0
      %p88 = por %p86, %p87
      %p89 = scmp.ne.s32.totalorder %s75, %s76
      %p90 = scmp.eq.s32.totalorder %s21, 1
      %p91 = por %p89, %p90
      %p93 = scmp.ne.s32.totalorder %s76, %s92
      %p94 = scmp.eq.s32.totalorder %s21, 0
      %p95 = por %p93, %p94
      %p96 = scmp.le.s32.totalorder 1, %s15
      %p97 = scmp.lt.s32.totalorder %s15, 3
      %p98 = pnand %p96, %p97
      %p99 = pneg %p98
      // Predicated region
      $region9: #{tpu_custom_call.1} parent=5 // pred_check
        _
      $region10: #{tpu_custom_call.1} parent=5 // pred_check_branch
        %101 = sbr.rel (%p98) target = $region12
      $region11: #{tpu_custom_call.1} parent=5 // pred_region
        %s102 = ssub.s32 %s15, 1
        // Predicated region
        $region13: #{tpu_custom_call.1} parent=11 // pred_check
          %p103 = pneg %p62
        $region14: #{tpu_custom_call.1} parent=11 // pred_check_branch
          %105 = sbr.rel (%p103) target = $region16
        $region15: #{tpu_custom_call.1} parent=11 // pred_region
          %107 = vsyncadd [#allocation6], 0
          %s108 = sshll.u32 %s1, 4
          %s109 = int_to_ptr.hbm [resolvable:$true] %s108
          %s110 = sshll.u32 [#allocation5], 4
          %s111 = int_to_ptr.vmem [resolvable:$true] %s110
          %116 = dma.hbm_to_vmem [thread:$0]  %s109, 24576, %s111, [#allocation6], 256, 256, 16
        $region16: #{tpu_custom_call.1} parent=11 // pred_fallthru
          _
      $region12: #{tpu_custom_call.1} parent=5 // pred_fallthru
        _
      %p117 = scmp.lt.s32.totalorder %s15, 2
      // Predicated region
      $region17: #{tpu_custom_call.1} parent=5 // pred_check
        %p118 = pneg %p117
      $region18: #{tpu_custom_call.1} parent=5 // pred_check_branch
        %120 = sbr.rel (%p118) target = $region20
      $region19: #{tpu_custom_call.1} parent=5 // pred_region
        // Predicated region
        $region21: #{tpu_custom_call.1} parent=19 // pred_check
          %p121 = pneg %p35
        $region22: #{tpu_custom_call.1} parent=19 // pred_check_branch
          %123 = sbr.rel (%p121) target = $region24
        $region23: #{tpu_custom_call.1} parent=19 // pred_region
          %s124 = sand.u32 %s25, 1
          %s125 = scalar_lea.sflag [#allocation3], %s124
          %s126 = sand.u32 %s25, 1
          %s127 = smul.addr %s126, 96
          %s128 = scalar_lea.vmem [#allocation2], %s127
          %s129 = smul.u32 2, %s15
          %s130 = ssub.s32 3, %s129
          %p131 = scmp.lt.s32.totalorder %s130, 2
          %s132 = scalar_select %p131, %s130, 2
          %s133 = smul.u32 8, %s132
          %s134 = smul.u32 %s133, 6
          %s135 = ssub.s32 96, %s134
          %s136 = sshll.u32 %s135, 4
          %137 = vsyncadd %s125, %s136
          %p138 = scmp.ne.s32.totalorder 0, %s134
          %s139 = smul.addr %s129, 6
          %s140 = smul.addr %s139, 8
          %s141 = scalar_lea.hbm %s0, %s140
          %s142 = smul.u32 48, %s132
          %s143 = sshll.u32 %s141, 4
          %s144 = int_to_ptr.hbm [resolvable:$true] %s143
          %s145 = sshll.u32 %s128, 4
          %s146 = int_to_ptr.vmem [resolvable:$true] %s145
          %s147 = sshll.u32 %s142, 4
          %151 = dma.hbm_to_vmem [thread:$0]  (%p138), %s144, %s147, %s146, %s125, 768, 768, 48
        $region24: #{tpu_custom_call.1} parent=19 // pred_fallthru
          _
      $region20: #{tpu_custom_call.1} parent=5 // pred_fallthru
        _
      %p152 = scmp.le.s32.totalorder 1, %s15
      %p153 = scmp.lt.s32.totalorder %s15, 3
      %p154 = pnand %p152, %p153
      %p155 = pneg %p154
      // Predicated region
      $region25: #{tpu_custom_call.1} parent=5 // pred_check
        _
      $region26: #{tpu_custom_call.1} parent=5 // pred_check_branch
        %157 = sbr.rel (%p154) target = $region28
      $region27: #{tpu_custom_call.1} parent=5 // pred_region
        %s158 = ssub.s32 %s15, 1
        %s159 = sand.u32 %s28, 1
        %s160 = scalar_lea.sflag [#allocation3], %s159
        %s161 = sand.u32 %s28, 1
        %s162 = smul.addr %s161, 96
        %s163 = scalar_lea.vmem [#allocation2], %s162
        // Predicated region
        $region29: #{tpu_custom_call.1} parent=27 // pred_check
          %p164 = pneg %p41
        $region30: #{tpu_custom_call.1} parent=27 // pred_check_branch
          %166 = sbr.rel (%p164) target = $region32
        $region31: #{tpu_custom_call.1} parent=27 // pred_region
          %168 = dma.done %s160, 1536
        $region32: #{tpu_custom_call.1} parent=27 // pred_fallthru
          _
        // Predicated region
        $region33: #{tpu_custom_call.1} parent=27 // pred_check
          %p169 = pneg %p62
        $region34: #{tpu_custom_call.1} parent=27 // pred_check_branch
          %171 = sbr.rel (%p169) target = $region36
        $region35: #{tpu_custom_call.1} parent=27 // pred_region
          %173 = dma.done [#allocation6], 24576
        $region36: #{tpu_custom_call.1} parent=27 // pred_fallthru
          _
        %s174 = sand.u32 %s28, 1
        %s175 = scalar_lea.sflag [#allocation3], %s174
        %s176 = sand.u32 %s28, 1
        %s177 = smul.addr %s176, 96
        %s178 = scalar_lea.vmem [#allocation2], %s177
        %p179 = pneg %p41
        %p180 = pneg %p38
        %p181 = pneg %p62
        %p182 = pneg %p59
        %p183 = pneg %p88
        %p184 = pneg %p85
        %s185 = sand.u32 %s75, 1
        %s186 = scalar_lea.sflag [#allocation4], %s185
        %s187 = sand.u32 %s75, 1
        %s188 = smul.addr %s187, 32
        %s189 = scalar_lea.vmem [#allocation7], %s188
        %s190 = smul.u32 2, %s20
        %s191 = ssub.s32 3, %s190
        %p192 = scmp.lt.s32.totalorder %s191, 2
        %s193 = scalar_select %p192, %s191, 2
        %s194 = smul.u32 8, %s193
        %s195 = smul.u32 %s194, 6
        %s196 = smul.u32 2, %s20
        %s197 = ssub.s32 3, %s196
        %p198 = scmp.lt.s32.totalorder %s197, 2
        %s199 = scalar_select %p198, %s197, 2
        %s200 = smul.u32 8, %s199
        %s201 = smul.u32 %s200, 2
        %v202 = vld [vmem:[%s163] sm:$0xff]
        %v203 = vld [vmem:[%s163 + $0x8] sm:$0xff]
        %v204 = vld [vmem:[%s163 + $0x10] sm:$0xff]
        %v205 = vld [vmem:[%s163 + $0x18] sm:$0xff]
        %v206 = vld [vmem:[%s163 + $0x20] sm:$0xff]
        %v207 = vld [vmem:[%s163 + $0x28] sm:$0xff]
        %v208 = vld [vmem:[%s163 + $0x30] sm:$0xff]
        %v209 = vld [vmem:[%s163 + $0x38] sm:$0xff]
        %v210 = vld [vmem:[%s163 + $0x40] sm:$0xff]
        %v211 = vld [vmem:[%s163 + $0x48] sm:$0xff]
        %v212 = vld [vmem:[%s163 + $0x50] sm:$0xff]
        %v213 = vld [vmem:[%s163 + $0x58] sm:$0xff]
        %v214 = vld [vmem:[#allocation5] sm:$0xff]
        %v215 = vld [vmem:[#allocation5 + $0x8] sm:$0xff]
        %v216 = vld [vmem:[#allocation5 + $0x10] sm:$0xff]
        %v217 = vld [vmem:[#allocation5 + $0x18] sm:$0xff]
        %v218 = vld [vmem:[#allocation5 + $0x20] sm:$0xff]
        %v219 = vld [vmem:[#allocation5 + $0x28] sm:$0xff]
        %v220 = vld [vmem:[#allocation5 + $0x30] sm:$0xff]
        %v221 = vld [vmem:[#allocation5 + $0x38] sm:$0xff]
        %v222 = vld [vmem:[#allocation5 + $0x40] sm:$0xff]
        %v223 = vld [vmem:[#allocation5 + $0x48] sm:$0xff]
        %v224 = vld [vmem:[#allocation5 + $0x50] sm:$0xff]
        %v225 = vld [vmem:[#allocation5 + $0x58] sm:$0xff]
        %v226 = vld [vmem:[#allocation5 + $0x60] sm:$0xff]
        %v227 = vld [vmem:[#allocation5 + $0x68] sm:$0xff]
        %v228 = vld [vmem:[#allocation5 + $0x70] sm:$0xff]
        %v229 = vld [vmem:[#allocation5 + $0x78] sm:$0xff]
        %v230 = vld [vmem:[#allocation5 + $0x80] sm:$0xff]
        %v231 = vld [vmem:[#allocation5 + $0x88] sm:$0xff]
        %v232 = vld [vmem:[#allocation5 + $0x90] sm:$0xff]
        %v233 = vld [vmem:[#allocation5 + $0x98] sm:$0xff]
        %v234 = vld [vmem:[#allocation5 + $0xa0] sm:$0xff]
        %v235 = vld [vmem:[#allocation5 + $0xa8] sm:$0xff]
        %v236 = vld [vmem:[#allocation5 + $0xb0] sm:$0xff]
        %v237 = vld [vmem:[#allocation5 + $0xb8] sm:$0xff]
        %v238 = vld [vmem:[#allocation5 + $0xc0] sm:$0xff]
        %v239 = vld [vmem:[#allocation5 + $0xc8] sm:$0xff]
        %v240 = vld [vmem:[#allocation5 + $0xd0] sm:$0xff]
        %v241 = vld [vmem:[#allocation5 + $0xd8] sm:$0xff]
        %v242 = vld [vmem:[#allocation5 + $0xe0] sm:$0xff]
        %v243 = vld [vmem:[#allocation5 + $0xe8] sm:$0xff]
        %v244 = vld [vmem:[#allocation5 + $0xf0] sm:$0xff]
        %v245 = vld [vmem:[#allocation5 + $0xf8] sm:$0xff]
        %v246 = vld [vmem:[#allocation5 + $0x100] sm:$0xff]
        %v247 = vld [vmem:[#allocation5 + $0x108] sm:$0xff]
        %v248 = vld [vmem:[#allocation5 + $0x110] sm:$0xff]
        %v249 = vld [vmem:[#allocation5 + $0x118] sm:$0xff]
        %v250 = vld [vmem:[#allocation5 + $0x120] sm:$0xff]
        %v251 = vld [vmem:[#allocation5 + $0x128] sm:$0xff]
        %v252 = vld [vmem:[#allocation5 + $0x130] sm:$0xff]
        %v253 = vld [vmem:[#allocation5 + $0x138] sm:$0xff]
        %v254 = vld [vmem:[#allocation5 + $0x140] sm:$0xff]
        %v255 = vld [vmem:[#allocation5 + $0x148] sm:$0xff]
        %v256 = vld [vmem:[#allocation5 + $0x150] sm:$0xff]
        %v257 = vld [vmem:[#allocation5 + $0x158] sm:$0xff]
        %v258 = vld [vmem:[#allocation5 + $0x160] sm:$0xff]
        %v259 = vld [vmem:[#allocation5 + $0x168] sm:$0xff]
        %v260 = vld [vmem:[#allocation5 + $0x170] sm:$0xff]
        %v261 = vld [vmem:[#allocation5 + $0x178] sm:$0xff]
        %v262 = vld [vmem:[#allocation5 + $0x180] sm:$0xff]
        %v263 = vld [vmem:[#allocation5 + $0x188] sm:$0xff]
        %v264 = vld [vmem:[#allocation5 + $0x190] sm:$0xff]
        %v265 = vld [vmem:[#allocation5 + $0x198] sm:$0xff]
        %v266 = vld [vmem:[#allocation5 + $0x1a0] sm:$0xff]
        %v267 = vld [vmem:[#allocation5 + $0x1a8] sm:$0xff]
        %v268 = vld [vmem:[#allocation5 + $0x1b0] sm:$0xff]
        %v269 = vld [vmem:[#allocation5 + $0x1b8] sm:$0xff]
        %v270 = vld [vmem:[#allocation5 + $0x1c0] sm:$0xff]
        %v271 = vld [vmem:[#allocation5 + $0x1c8] sm:$0xff]
        %v272 = vld [vmem:[#allocation5 + $0x1d0] sm:$0xff]
        %v273 = vld [vmem:[#allocation5 + $0x1d8] sm:$0xff]
        %v274 = vld [vmem:[#allocation5 + $0x1e0] sm:$0xff]
        %v275 = vld [vmem:[#allocation5 + $0x1e8] sm:$0xff]
        %v276 = vld [vmem:[#allocation5 + $0x1f0] sm:$0xff]
        %v277 = vld [vmem:[#allocation5 + $0x1f8] sm:$0xff]
        %v278 = vld [vmem:[#allocation5 + $0x200] sm:$0xff]
        %v279 = vld [vmem:[#allocation5 + $0x208] sm:$0xff]
        %v280 = vld [vmem:[#allocation5 + $0x210] sm:$0xff]
        %v281 = vld [vmem:[#allocation5 + $0x218] sm:$0xff]
        %v282 = vld [vmem:[#allocation5 + $0x220] sm:$0xff]
        %v283 = vld [vmem:[#allocation5 + $0x228] sm:$0xff]
        %v284 = vld [vmem:[#allocation5 + $0x230] sm:$0xff]
        %v285 = vld [vmem:[#allocation5 + $0x238] sm:$0xff]
        %v286 = vld [vmem:[#allocation5 + $0x240] sm:$0xff]
        %v287 = vld [vmem:[#allocation5 + $0x248] sm:$0xff]
        %v288 = vld [vmem:[#allocation5 + $0x250] sm:$0xff]
        %v289 = vld [vmem:[#allocation5 + $0x258] sm:$0xff]
        %v290 = vld [vmem:[#allocation5 + $0x260] sm:$0xff]
        %v291 = vld [vmem:[#allocation5 + $0x268] sm:$0xff]
        %v292 = vld [vmem:[#allocation5 + $0x270] sm:$0xff]
        %v293 = vld [vmem:[#allocation5 + $0x278] sm:$0xff]
        %v294 = vld [vmem:[#allocation5 + $0x280] sm:$0xff]
        %v295 = vld [vmem:[#allocation5 + $0x288] sm:$0xff]
        %v296 = vld [vmem:[#allocation5 + $0x290] sm:$0xff]
        %v297 = vld [vmem:[#allocation5 + $0x298] sm:$0xff]
        %v298 = vld [vmem:[#allocation5 + $0x2a0] sm:$0xff]
        %v299 = vld [vmem:[#allocation5 + $0x2a8] sm:$0xff]
        %v300 = vld [vmem:[#allocation5 + $0x2b0] sm:$0xff]
        %v301 = vld [vmem:[#allocation5 + $0x2b8] sm:$0xff]
        %v302 = vld [vmem:[#allocation5 + $0x2c0] sm:$0xff]
        %v303 = vld [vmem:[#allocation5 + $0x2c8] sm:$0xff]
        %v304 = vld [vmem:[#allocation5 + $0x2d0] sm:$0xff]
        %v305 = vld [vmem:[#allocation5 + $0x2d8] sm:$0xff]
        %v306 = vld [vmem:[#allocation5 + $0x2e0] sm:$0xff]
        %v307 = vld [vmem:[#allocation5 + $0x2e8] sm:$0xff]
        %v308 = vld [vmem:[#allocation5 + $0x2f0] sm:$0xff]
        %v309 = vld [vmem:[#allocation5 + $0x2f8] sm:$0xff]
        %v310 = vld [vmem:[#allocation5 + $0x300] sm:$0xff]
        %v311 = vld [vmem:[#allocation5 + $0x308] sm:$0xff]
        %v312 = vld [vmem:[#allocation5 + $0x310] sm:$0xff]
        %v313 = vld [vmem:[#allocation5 + $0x318] sm:$0xff]
        %v314 = vld [vmem:[#allocation5 + $0x320] sm:$0xff]
        %v315 = vld [vmem:[#allocation5 + $0x328] sm:$0xff]
        %v316 = vld [vmem:[#allocation5 + $0x330] sm:$0xff]
        %v317 = vld [vmem:[#allocation5 + $0x338] sm:$0xff]
        %v318 = vld [vmem:[#allocation5 + $0x340] sm:$0xff]
        %v319 = vld [vmem:[#allocation5 + $0x348] sm:$0xff]
        %v320 = vld [vmem:[#allocation5 + $0x350] sm:$0xff]
        %v321 = vld [vmem:[#allocation5 + $0x358] sm:$0xff]
        %v322 = vld [vmem:[#allocation5 + $0x360] sm:$0xff]
        %v323 = vld [vmem:[#allocation5 + $0x368] sm:$0xff]
        %v324 = vld [vmem:[#allocation5 + $0x370] sm:$0xff]
        %v325 = vld [vmem:[#allocation5 + $0x378] sm:$0xff]
        %v326 = vld [vmem:[#allocation5 + $0x380] sm:$0xff]
        %v327 = vld [vmem:[#allocation5 + $0x388] sm:$0xff]
        %v328 = vld [vmem:[#allocation5 + $0x390] sm:$0xff]
        %v329 = vld [vmem:[#allocation5 + $0x398] sm:$0xff]
        %v330 = vld [vmem:[#allocation5 + $0x3a0] sm:$0xff]
        %v331 = vld [vmem:[#allocation5 + $0x3a8] sm:$0xff]
        %v332 = vld [vmem:[#allocation5 + $0x3b0] sm:$0xff]
        %v333 = vld [vmem:[#allocation5 + $0x3b8] sm:$0xff]
        %v334 = vld [vmem:[#allocation5 + $0x3c0] sm:$0xff]
        %v335 = vld [vmem:[#allocation5 + $0x3c8] sm:$0xff]
        %v336 = vld [vmem:[#allocation5 + $0x3d0] sm:$0xff]
        %v337 = vld [vmem:[#allocation5 + $0x3d8] sm:$0xff]
        %v338 = vld [vmem:[#allocation5 + $0x3e0] sm:$0xff]
        %v339 = vld [vmem:[#allocation5 + $0x3e8] sm:$0xff]
        %v340 = vld [vmem:[#allocation5 + $0x3f0] sm:$0xff]
        %v341 = vld [vmem:[#allocation5 + $0x3f8] sm:$0xff]
        %v342 = vld [vmem:[#allocation5 + $0x400] sm:$0xff]
        %v343 = vld [vmem:[#allocation5 + $0x408] sm:$0xff]
        %v344 = vld [vmem:[#allocation5 + $0x410] sm:$0xff]
        %v345 = vld [vmem:[#allocation5 + $0x418] sm:$0xff]
        %v346 = vld [vmem:[#allocation5 + $0x420] sm:$0xff]
        %v347 = vld [vmem:[#allocation5 + $0x428] sm:$0xff]
        %v348 = vld [vmem:[#allocation5 + $0x430] sm:$0xff]
        %v349 = vld [vmem:[#allocation5 + $0x438] sm:$0xff]
        %v350 = vld [vmem:[#allocation5 + $0x440] sm:$0xff]
        %v351 = vld [vmem:[#allocation5 + $0x448] sm:$0xff]
        %v352 = vld [vmem:[#allocation5 + $0x450] sm:$0xff]
        %v353 = vld [vmem:[#allocation5 + $0x458] sm:$0xff]
        %v354 = vld [vmem:[#allocation5 + $0x460] sm:$0xff]
        %v355 = vld [vmem:[#allocation5 + $0x468] sm:$0xff]
        %v356 = vld [vmem:[#allocation5 + $0x470] sm:$0xff]
        %v357 = vld [vmem:[#allocation5 + $0x478] sm:$0xff]
        %v358 = vld [vmem:[#allocation5 + $0x480] sm:$0xff]
        %v359 = vld [vmem:[#allocation5 + $0x488] sm:$0xff]
        %v360 = vld [vmem:[#allocation5 + $0x490] sm:$0xff]
        %v361 = vld [vmem:[#allocation5 + $0x498] sm:$0xff]
        %v362 = vld [vmem:[#allocation5 + $0x4a0] sm:$0xff]
        %v363 = vld [vmem:[#allocation5 + $0x4a8] sm:$0xff]
        %v364 = vld [vmem:[#allocation5 + $0x4b0] sm:$0xff]
        %v365 = vld [vmem:[#allocation5 + $0x4b8] sm:$0xff]
        %v366 = vld [vmem:[#allocation5 + $0x4c0] sm:$0xff]
        %v367 = vld [vmem:[#allocation5 + $0x4c8] sm:$0xff]
        %v368 = vld [vmem:[#allocation5 + $0x4d0] sm:$0xff]
        %v369 = vld [vmem:[#allocation5 + $0x4d8] sm:$0xff]
        %v370 = vld [vmem:[#allocation5 + $0x4e0] sm:$0xff]
        %v371 = vld [vmem:[#allocation5 + $0x4e8] sm:$0xff]
        %v372 = vld [vmem:[#allocation5 + $0x4f0] sm:$0xff]
        %v373 = vld [vmem:[#allocation5 + $0x4f8] sm:$0xff]
        %v374 = vld [vmem:[#allocation5 + $0x500] sm:$0xff]
        %v375 = vld [vmem:[#allocation5 + $0x508] sm:$0xff]
        %v376 = vld [vmem:[#allocation5 + $0x510] sm:$0xff]
        %v377 = vld [vmem:[#allocation5 + $0x518] sm:$0xff]
        %v378 = vld [vmem:[#allocation5 + $0x520] sm:$0xff]
        %v379 = vld [vmem:[#allocation5 + $0x528] sm:$0xff]
        %v380 = vld [vmem:[#allocation5 + $0x530] sm:$0xff]
        %v381 = vld [vmem:[#allocation5 + $0x538] sm:$0xff]
        %v382 = vld [vmem:[#allocation5 + $0x540] sm:$0xff]
        %v383 = vld [vmem:[#allocation5 + $0x548] sm:$0xff]
        %v384 = vld [vmem:[#allocation5 + $0x550] sm:$0xff]
        %v385 = vld [vmem:[#allocation5 + $0x558] sm:$0xff]
        %v386 = vld [vmem:[#allocation5 + $0x560] sm:$0xff]
        %v387 = vld [vmem:[#allocation5 + $0x568] sm:$0xff]
        %v388 = vld [vmem:[#allocation5 + $0x570] sm:$0xff]
        %v389 = vld [vmem:[#allocation5 + $0x578] sm:$0xff]
        %v390 = vld [vmem:[#allocation5 + $0x580] sm:$0xff]
        %v391 = vld [vmem:[#allocation5 + $0x588] sm:$0xff]
        %v392 = vld [vmem:[#allocation5 + $0x590] sm:$0xff]
        %v393 = vld [vmem:[#allocation5 + $0x598] sm:$0xff]
        %v394 = vld [vmem:[#allocation5 + $0x5a0] sm:$0xff]
        %v395 = vld [vmem:[#allocation5 + $0x5a8] sm:$0xff]
        %v396 = vld [vmem:[#allocation5 + $0x5b0] sm:$0xff]
        %v397 = vld [vmem:[#allocation5 + $0x5b8] sm:$0xff]
        %v398 = vld [vmem:[#allocation5 + $0x5c0] sm:$0xff]
        %v399 = vld [vmem:[#allocation5 + $0x5c8] sm:$0xff]
        %v400 = vld [vmem:[#allocation5 + $0x5d0] sm:$0xff]
        %v401 = vld [vmem:[#allocation5 + $0x5d8] sm:$0xff]
        %v402 = vld [vmem:[#allocation5 + $0x5e0] sm:$0xff]
        %v403 = vld [vmem:[#allocation5 + $0x5e8] sm:$0xff]
        %v404 = vld [vmem:[#allocation5 + $0x5f0] sm:$0xff]
        %v405 = vld [vmem:[#allocation5 + $0x5f8] sm:$0xff]
        %406 = vmatpush.msra.mxu0 %v244
        %407 = vmatpush.msra.mxu0 %v242
        %408 = vmatpush.msra.mxu0 %v240
        %409 = vmatpush.msra.mxu0 %v238
        %410 = vmatpush.msra.mxu0 %v236
        %411 = vmatpush.msra.mxu0 %v234
        %412 = vmatpush.msra.mxu0 %v232
        %413 = vmatpush.msra.mxu0 %v230
        %414 = vmatpush.msra.mxu0 %v228
        %415 = vmatpush.msra.mxu0 %v226
        %416 = vmatpush.msra.mxu0 %v224
        %417 = vmatpush.msra.mxu0 %v222
        %418 = vmatpush.msra.mxu0 %v220
        %419 = vmatpush.msra.mxu0 %v218
        %420 = vmatpush.msra.mxu0 %v216
        %421 = vmatpush.msra.mxu0 %v214
        %422 = vmatmul.f32.gmra.mxu0 %v202
        %v423 = vpop.f32.mrf.mxu0
        %v424 = vadd.f32 0.0, %v423
        %425 = vmatmul.f32.gmra.mxu0 %v208
        %v426 = vpop.f32.mrf.mxu0
        %v427 = vadd.f32 0.0, %v426
        %428 = vdwg.mxu0
        %429 = vmatpush.msra.mxu0 %v276
        %430 = vmatpush.msra.mxu0 %v274
        %431 = vmatpush.msra.mxu0 %v272
        %432 = vmatpush.msra.mxu0 %v270
        %433 = vmatpush.msra.mxu0 %v268
        %434 = vmatpush.msra.mxu0 %v266
        %435 = vmatpush.msra.mxu0 %v264
        %436 = vmatpush.msra.mxu0 %v262
        %437 = vmatpush.msra.mxu0 %v260
        %438 = vmatpush.msra.mxu0 %v258
        %439 = vmatpush.msra.mxu0 %v256
        %440 = vmatpush.msra.mxu0 %v254
        %441 = vmatpush.msra.mxu0 %v252
        %442 = vmatpush.msra.mxu0 %v250
        %443 = vmatpush.msra.mxu0 %v248
        %444 = vmatpush.msra.mxu0 %v246
        %445 = vmatmul.f32.gmra.mxu0 %v203
        %v446 = vpop.f32.mrf.mxu0
        %v447 = vadd.f32 %v424, %v446
        %448 = vmatmul.f32.gmra.mxu0 %v209
        %v449 = vpop.f32.mrf.mxu0
        %v450 = vadd.f32 %v427, %v449
        %451 = vdwg.mxu0
        %452 = vmatpush.msra.mxu0 %v308
        %453 = vmatpush.msra.mxu0 %v306
        %454 = vmatpush.msra.mxu0 %v304
        %455 = vmatpush.msra.mxu0 %v302
        %456 = vmatpush.msra.mxu0 %v300
        %457 = vmatpush.msra.mxu0 %v298
        %458 = vmatpush.msra.mxu0 %v296
        %459 = vmatpush.msra.mxu0 %v294
        %460 = vmatpush.msra.mxu0 %v292
        %461 = vmatpush.msra.mxu0 %v290
        %462 = vmatpush.msra.mxu0 %v288
        %463 = vmatpush.msra.mxu0 %v286
        %464 = vmatpush.msra.mxu0 %v284
        %465 = vmatpush.msra.mxu0 %v282
        %466 = vmatpush.msra.mxu0 %v280
        %467 = vmatpush.msra.mxu0 %v278
        %468 = vmatmul.f32.gmra.mxu0 %v204
        %v469 = vpop.f32.mrf.mxu0
        %v470 = vadd.f32 %v447, %v469
        %471 = vmatmul.f32.gmra.mxu0 %v210
        %v472 = vpop.f32.mrf.mxu0
        %v473 = vadd.f32 %v450, %v472
        %474 = vdwg.mxu0
        %475 = vmatpush.msra.mxu0 %v340
        %476 = vmatpush.msra.mxu0 %v338
        %477 = vmatpush.msra.mxu0 %v336
        %478 = vmatpush.msra.mxu0 %v334
        %479 = vmatpush.msra.mxu0 %v332
        %480 = vmatpush.msra.mxu0 %v330
        %481 = vmatpush.msra.mxu0 %v328
        %482 = vmatpush.msra.mxu0 %v326
        %483 = vmatpush.msra.mxu0 %v324
        %484 = vmatpush.msra.mxu0 %v322
        %485 = vmatpush.msra.mxu0 %v320
        %486 = vmatpush.msra.mxu0 %v318
        %487 = vmatpush.msra.mxu0 %v316
        %488 = vmatpush.msra.mxu0 %v314
        %489 = vmatpush.msra.mxu0 %v312
        %490 = vmatpush.msra.mxu0 %v310
        %491 = vmatmul.f32.gmra.mxu0 %v205
        %v492 = vpop.f32.mrf.mxu0
        %v493 = vadd.f32 %v470, %v492
        %494 = vmatmul.f32.gmra.mxu0 %v211
        %v495 = vpop.f32.mrf.mxu0
        %v496 = vadd.f32 %v473, %v495
        %497 = vdwg.mxu0
        %498 = vmatpush.msra.mxu0 %v372
        %499 = vmatpush.msra.mxu0 %v370
        %500 = vmatpush.msra.mxu0 %v368
        %501 = vmatpush.msra.mxu0 %v366
        %502 = vmatpush.msra.mxu0 %v364
        %503 = vmatpush.msra.mxu0 %v362
        %504 = vmatpush.msra.mxu0 %v360
        %505 = vmatpush.msra.mxu0 %v358
        %506 = vmatpush.msra.mxu0 %v356
        %507 = vmatpush.msra.mxu0 %v354
        %508 = vmatpush.msra.mxu0 %v352
        %509 = vmatpush.msra.mxu0 %v350
        %510 = vmatpush.msra.mxu0 %v348
        %511 = vmatpush.msra.mxu0 %v346
        %512 = vmatpush.msra.mxu0 %v344
        %513 = vmatpush.msra.mxu0 %v342
        %514 = vmatmul.f32.gmra.mxu0 %v206
        %v515 = vpop.f32.mrf.mxu0
        %v516 = vadd.f32 %v493, %v515
        %517 = vmatmul.f32.gmra.mxu0 %v212
        %v518 = vpop.f32.mrf.mxu0
        %v519 = vadd.f32 %v496, %v518
        %520 = vdwg.mxu0
        %521 = vmatpush.msra.mxu0 %v404
        %522 = vmatpush.msra.mxu0 %v402
        %523 = vmatpush.msra.mxu0 %v400
        %524 = vmatpush.msra.mxu0 %v398
        %525 = vmatpush.msra.mxu0 %v396
        %526 = vmatpush.msra.mxu0 %v394
        %527 = vmatpush.msra.mxu0 %v392
        %528 = vmatpush.msra.mxu0 %v390
        %529 = vmatpush.msra.mxu0 %v388
        %530 = vmatpush.msra.mxu0 %v386
        %531 = vmatpush.msra.mxu0 %v384
        %532 = vmatpush.msra.mxu0 %v382
        %533 = vmatpush.msra.mxu0 %v380
        %534 = vmatpush.msra.mxu0 %v378
        %535 = vmatpush.msra.mxu0 %v376
        %536 = vmatpush.msra.mxu0 %v374
        %537 = vmatmul.f32.gmra.mxu0 %v207
        %v538 = vpop.f32.mrf.mxu0
        %v539 = vadd.f32 %v516, %v538
        %540 = vmatmul.f32.gmra.mxu0 %v213
        %v541 = vpop.f32.mrf.mxu0
        %v542 = vadd.f32 %v519, %v541
        %543 = vdwg.mxu0
        %544 = vmatpush.msra.mxu0 %v245
        %545 = vmatpush.msra.mxu0 %v243
        %546 = vmatpush.msra.mxu0 %v241
        %547 = vmatpush.msra.mxu0 %v239
        %548 = vmatpush.msra.mxu0 %v237
        %549 = vmatpush.msra.mxu0 %v235
        %550 = vmatpush.msra.mxu0 %v233
        %551 = vmatpush.msra.mxu0 %v231
        %552 = vmatpush.msra.mxu0 %v229
        %553 = vmatpush.msra.mxu0 %v227
        %554 = vmatpush.msra.mxu0 %v225
        %555 = vmatpush.msra.mxu0 %v223
        %556 = vmatpush.msra.mxu0 %v221
        %557 = vmatpush.msra.mxu0 %v219
        %558 = vmatpush.msra.mxu0 %v217
        %559 = vmatpush.msra.mxu0 %v215
        %560 = vmatmul.f32.gmra.mxu0 %v202
        %v561 = vpop.f32.mrf.mxu0
        %v562 = vadd.f32 0.0, %v561
        %563 = vmatmul.f32.gmra.mxu0 %v208
        %v564 = vpop.f32.mrf.mxu0
        %v565 = vadd.f32 0.0, %v564
        %566 = vdwg.mxu0
        %567 = vmatpush.msra.mxu0 %v277
        %568 = vmatpush.msra.mxu0 %v275
        %569 = vmatpush.msra.mxu0 %v273
        %570 = vmatpush.msra.mxu0 %v271
        %571 = vmatpush.msra.mxu0 %v269
        %572 = vmatpush.msra.mxu0 %v267
        %573 = vmatpush.msra.mxu0 %v265
        %574 = vmatpush.msra.mxu0 %v263
        %575 = vmatpush.msra.mxu0 %v261
        %576 = vmatpush.msra.mxu0 %v259
        %577 = vmatpush.msra.mxu0 %v257
        %578 = vmatpush.msra.mxu0 %v255
        %579 = vmatpush.msra.mxu0 %v253
        %580 = vmatpush.msra.mxu0 %v251
        %581 = vmatpush.msra.mxu0 %v249
        %582 = vmatpush.msra.mxu0 %v247
        %583 = vmatmul.f32.gmra.mxu0 %v203
        %v584 = vpop.f32.mrf.mxu0
        %v585 = vadd.f32 %v562, %v584
        %586 = vmatmul.f32.gmra.mxu0 %v209
        %v587 = vpop.f32.mrf.mxu0
        %v588 = vadd.f32 %v565, %v587
        %589 = vdwg.mxu0
        %590 = vmatpush.msra.mxu0 %v309
        %591 = vmatpush.msra.mxu0 %v307
        %592 = vmatpush.msra.mxu0 %v305
        %593 = vmatpush.msra.mxu0 %v303
        %594 = vmatpush.msra.mxu0 %v301
        %595 = vmatpush.msra.mxu0 %v299
        %596 = vmatpush.msra.mxu0 %v297
        %597 = vmatpush.msra.mxu0 %v295
        %598 = vmatpush.msra.mxu0 %v293
        %599 = vmatpush.msra.mxu0 %v291
        %600 = vmatpush.msra.mxu0 %v289
        %601 = vmatpush.msra.mxu0 %v287
        %602 = vmatpush.msra.mxu0 %v285
        %603 = vmatpush.msra.mxu0 %v283
        %604 = vmatpush.msra.mxu0 %v281
        %605 = vmatpush.msra.mxu0 %v279
        %606 = vmatmul.f32.gmra.mxu0 %v204
        %v607 = vpop.f32.mrf.mxu0
        %v608 = vadd.f32 %v585, %v607
        %609 = vmatmul.f32.gmra.mxu0 %v210
        %v610 = vpop.f32.mrf.mxu0
        %v611 = vadd.f32 %v588, %v610
        %612 = vdwg.mxu0
        %613 = vmatpush.msra.mxu0 %v341
        %614 = vmatpush.msra.mxu0 %v339
        %615 = vmatpush.msra.mxu0 %v337
        %616 = vmatpush.msra.mxu0 %v335
        %617 = vmatpush.msra.mxu0 %v333
        %618 = vmatpush.msra.mxu0 %v331
        %619 = vmatpush.msra.mxu0 %v329
        %620 = vmatpush.msra.mxu0 %v327
        %621 = vmatpush.msra.mxu0 %v325
        %622 = vmatpush.msra.mxu0 %v323
        %623 = vmatpush.msra.mxu0 %v321
        %624 = vmatpush.msra.mxu0 %v319
        %625 = vmatpush.msra.mxu0 %v317
        %626 = vmatpush.msra.mxu0 %v315
        %627 = vmatpush.msra.mxu0 %v313
        %628 = vmatpush.msra.mxu0 %v311
        %629 = vmatmul.f32.gmra.mxu0 %v205
        %v630 = vpop.f32.mrf.mxu0
        %v631 = vadd.f32 %v608, %v630
        %632 = vmatmul.f32.gmra.mxu0 %v211
        %v633 = vpop.f32.mrf.mxu0
        %v634 = vadd.f32 %v611, %v633
        %635 = vdwg.mxu0
        %636 = vmatpush.msra.mxu0 %v373
        %637 = vmatpush.msra.mxu0 %v371
        %638 = vmatpush.msra.mxu0 %v369
        %639 = vmatpush.msra.mxu0 %v367
        %640 = vmatpush.msra.mxu0 %v365
        %641 = vmatpush.msra.mxu0 %v363
        %642 = vmatpush.msra.mxu0 %v361
        %643 = vmatpush.msra.mxu0 %v359
        %644 = vmatpush.msra.mxu0 %v357
        %645 = vmatpush.msra.mxu0 %v355
        %646 = vmatpush.msra.mxu0 %v353
        %647 = vmatpush.msra.mxu0 %v351
        %648 = vmatpush.msra.mxu0 %v349
        %649 = vmatpush.msra.mxu0 %v347
        %650 = vmatpush.msra.mxu0 %v345
        %651 = vmatpush.msra.mxu0 %v343
        %652 = vmatmul.f32.gmra.mxu0 %v206
        %v653 = vpop.f32.mrf.mxu0
        %v654 = vadd.f32 %v631, %v653
        %655 = vmatmul.f32.gmra.mxu0 %v212
        %v656 = vpop.f32.mrf.mxu0
        %v657 = vadd.f32 %v634, %v656
        %658 = vdwg.mxu0
        %659 = vmatpush.msra.mxu0 %v405
        %660 = vmatpush.msra.mxu0 %v403
        %661 = vmatpush.msra.mxu0 %v401
        %662 = vmatpush.msra.mxu0 %v399
        %663 = vmatpush.msra.mxu0 %v397
        %664 = vmatpush.msra.mxu0 %v395
        %665 = vmatpush.msra.mxu0 %v393
        %666 = vmatpush.msra.mxu0 %v391
        %667 = vmatpush.msra.mxu0 %v389
        %668 = vmatpush.msra.mxu0 %v387
        %669 = vmatpush.msra.mxu0 %v385
        %670 = vmatpush.msra.mxu0 %v383
        %671 = vmatpush.msra.mxu0 %v381
        %672 = vmatpush.msra.mxu0 %v379
        %673 = vmatpush.msra.mxu0 %v377
        %674 = vmatpush.msra.mxu0 %v375
        %675 = vmatmul.f32.gmra.mxu0 %v207
        %v676 = vpop.f32.mrf.mxu0
        %v677 = vadd.f32 %v654, %v676
        %678 = vmatmul.f32.gmra.mxu0 %v213
        %v679 = vpop.f32.mrf.mxu0
        %v680 = vadd.f32 %v657, %v679
        %681 = vdwg.mxu0
        %682 = vst [vmem:[%s189] sm:$0xff] %v539
        %683 = vst [vmem:[%s189 + $0x8] sm:$0xff] %v677
        %684 = vst [vmem:[%s189 + $0x10] sm:$0xff] %v542
        %685 = vst [vmem:[%s189 + $0x18] sm:$0xff] %v680
        %s686 = sand.u32 %s75, 1
        %s687 = scalar_lea.sflag [#allocation4], %s686
        %s688 = sand.u32 %s75, 1
        %s689 = smul.addr %s688, 32
        %s690 = scalar_lea.vmem [#allocation7], %s689
        // Predicated region
        $region37: #{tpu_custom_call.1} parent=27 // pred_check
          %p691 = pneg %p85
        $region38: #{tpu_custom_call.1} parent=27 // pred_check_branch
          %693 = sbr.rel (%p691) target = $region40
        $region39: #{tpu_custom_call.1} parent=27 // pred_region
          %s694 = smul.u32 2, %s20
          %s695 = ssub.s32 3, %s694
          %p696 = scmp.lt.s32.totalorder %s695, 2
          %s697 = scalar_select %p696, %s695, 2
          %s698 = smul.u32 8, %s697
          %s699 = smul.u32 %s698, 2
          %s700 = ssub.s32 32, %s699
          %s701 = sshll.u32 %s700, 4
          %702 = vsyncadd %s687, %s701
          %p703 = scmp.ne.s32.totalorder 0, %s699
          %s704 = smul.addr %s694, 2
          %s705 = smul.addr %s704, 8
          %s706 = scalar_lea.hbm %s2, %s705
          %s707 = smul.u32 16, %s697
          %s708 = sshll.u32 %s690, 4
          %s709 = int_to_ptr.vmem [resolvable:$true] %s708
          %s710 = sshll.u32 %s706, 4
          %s711 = int_to_ptr.hbm [resolvable:$true] %s710
          %s712 = sshll.u32 %s707, 4
          %716 = dma.vmem_to_hbm [thread:$0]  (%p703), %s709, %s712, %s711, %s687, 256, 256, 16
        $region40: #{tpu_custom_call.1} parent=27 // pred_fallthru
          _
      $region28: #{tpu_custom_call.1} parent=5 // pred_fallthru
        _
      %p717 = scmp.le.s32.totalorder 2, %s15
      // Predicated region
      $region41: #{tpu_custom_call.1} parent=5 // pred_check
        %p718 = pneg %p717
      $region42: #{tpu_custom_call.1} parent=5 // pred_check_branch
        %720 = sbr.rel (%p718) target = $region44
      $region43: #{tpu_custom_call.1} parent=5 // pred_region
        %s721 = ssub.s32 %s15, 2
        // Predicated region
        $region45: #{tpu_custom_call.1} parent=43 // pred_check
          %p722 = pneg %p91
        $region46: #{tpu_custom_call.1} parent=43 // pred_check_branch
          %724 = sbr.rel (%p722) target = $region48
        $region47: #{tpu_custom_call.1} parent=43 // pred_region
          %s725 = sand.u32 %s76, 1
          %s726 = scalar_lea.sflag [#allocation4], %s725
          %s727 = sand.u32 %s76, 1
          %s728 = smul.addr %s727, 32
          %s729 = scalar_lea.vmem [#allocation7], %s728
          %731 = dma.done %s726, 512
        $region48: #{tpu_custom_call.1} parent=43 // pred_fallthru
          _
      $region44: #{tpu_custom_call.1} parent=5 // pred_fallthru
        _
    $region6: #{tpu_custom_call.1} parent=1 // loop_footer
      %s19 = sadd.s32 1, %s15
    $region7: #{tpu_custom_call.1} parent=1 // loop_footer_branch
      %14 = sbr.rel target = $region3
    $region8: #{tpu_custom_call.1} parent=1 // loop_exit
      _
    %732 = vsyncpa [#allocation3], 1
    %s733 = scalar_lea.sflag [#allocation3], 1
    %734 = vsyncpa %s733, 1
    %735 = vsyncpa [#allocation6], 1
    %736 = vsyncpa [#allocation4], 1
    %s737 = scalar_lea.sflag [#allocation4], 1
    %738 = vsyncpa %s737, 1

</llo_original>
